<compile_context>
chip_gen: v6e
topology: v6e:2x2x1
jax: 0.10.0
libtpu: 0.0.40
codegen_flags: <defaults>
</compile_context>

<pallas_src>
import functools

import jax
import jax.numpy as jnp
import numpy as np
from jax import lax
from jax.experimental import pallas as pl
from jax.experimental.pallas import tpu as pltpu


# ----------------------------------------------------------------------------
# Pallas kernel: one (batch, layer) pair per grid step.  NCT layout, x = (C, T).
# ----------------------------------------------------------------------------
def _wavenet_kernel(
    dil_ref,                                   # SMEM scalar prefetch: (nl,) int32
    x_ref, m_ref, g_ref,                       # (1,C,T) (1,1,T) (1,G,T)
    w_zin_ref, b_z_ref, w_rs_ref, b_rs_ref,    # per-layer weight blocks
    o_ref,                                     # (1,C,T) f32 output / skip accum
    x_state,                                   # (C,T) f32 scratch: residual state
    *, n_layers, kernel_size, dilation_rate, hidden,
):
    C, K = hidden, kernel_size
    T = x_ref.shape[-1]
    cdt = w_zin_ref.dtype                      # MXU compute dtype (bf16 or f32)
    layer = pl.program_id(1)

    # ---- init residual state + skip accumulator at the first layer ----------
    @pl.when(layer == 0)
    def _init():
        x_state[...] = x_ref[0].astype(jnp.float32)
        o_ref[0] = jnp.zeros((C, T), o_ref.dtype)

    m = m_ref[0]                               # (1, T) f32
    g = g_ref[0]                               # (G, T) cdt (pre-cast in wrapper)
    x = x_state[...]                           # (C, T) f32 residual state
    x_c = x.astype(cdt)                        # single cast; taps built in cdt

    # ---- K dilated taps: XLU rolls, conv zero-padding via lane mask ---------
    col = lax.broadcasted_iota(jnp.int32, (1, T), 1)
    half = (K - 1) // 2
    if dilation_rate == 1:
        d = 1                                  # static offsets -> static rolls
    else:
        d = dil_ref[layer]                     # per-layer dilation from SMEM
    taps = []
    for k in range(K):
        if k == half:
            taps.append(x_c)
            continue
        off = (k - half) * d
        shifted = pltpu.roll(x_c, shift=(-off) % T, axis=1)
        valid = (col + off >= 0) & (col + off < T)
        taps.append(jnp.where(valid, shifted, jnp.zeros_like(shifted)))

    # ---- one fused matmul: [cond 1x1 | dilated conv (all K taps, both gate
    #      halves)] @ [g ; taps], with cond_bias + in_layer bias folded in -----
    zin = jnp.concatenate([g] + taps, axis=0)                       # (G+K*C, T)
    z = (jnp.dot(w_zin_ref[0], zin, preferred_element_type=jnp.float32)
         + b_z_ref[0])                                              # (2C, T) f32

    # ---- gate: tanh * sigmoid, sigmoid via the tanh identity (half EUP work).
    # Dropout p=0 -> identity.
    acts = jnp.tanh(z[:C]) * (0.5 * (jnp.tanh(0.5 * z[C:]) + 1.0))  # (C, T) f32

    # ---- fused res/skip 1x1 conv (rows [:C] res, rows [C:] skip) -------------
    rs = (jnp.dot(w_rs_ref[0], acts.astype(cdt),
                  preferred_element_type=jnp.float32)
          + b_rs_ref[0])                                            # (2C, T) f32

    # skip accumulation lives in the (revisited) output block
    o_ref[0] = o_ref[0] + rs[C:]

    @pl.when(layer < n_layers - 1)
    def _res():
        x_state[...] = (x + rs[:C]) * m

    @pl.when(layer == n_layers - 1)
    def _fin():
        o_ref[0] = o_ref[0] * m


def _default_vmem_limit_bytes():
    """Raise the scoped-VMEM budget above the 16/32 MiB default, below physical."""
    try:
        kind = jax.devices()[0].device_kind.lower()
    except Exception:
        kind = ""
    if "v2" in kind or "v3" in kind:
        return None                      # tiny VMEM parts: keep compiler default
    if "v7" in kind or "7x" in kind:
        return 56 * 1024 * 1024          # v7x: 64 MiB physical per TensorCore
    return 100 * 1024 * 1024             # v5e / v6e: 128 MiB physical


# ----------------------------------------------------------------------------
# Wrapper: PyTorch NCT layout in/out, packs weights into the fused kernel layout.
# ----------------------------------------------------------------------------
def wavenet_pallas(x_nct, mask_n1t, g_ngt, params, *,
                   hidden, kernel_size, dilation_rate, n_layers, gin,
                   compute_dtype=jnp.bfloat16, vmem_limit_bytes=None):
    assert kernel_size % 2 == 1, "WaveNet requires odd kernel_size"
    B, C, T = x_nct.shape
    assert C == hidden
    G, nl, K = gin, n_layers, kernel_size

    in_w = params["in_w"]          # (nl, 2C, C, K)   PyTorch Conv1d layout
    in_b = params["in_b"]          # (nl, 2C)
    cond_w = params["cond_w"]      # (2C*nl, G, 1)
    cond_b = params["cond_b"]      # (2C*nl,)
    rs_w = params["rs_w"]          # list: (2C, C, 1) x (nl-1), (C, C, 1) last
    rs_b = params["rs_b"]          # list: (2C,) x (nl-1), (C,) last

    # Dilated conv: pack all K taps and both gate halves into (nl, 2C, K*C).
    # row o, column k*C + c  <->  in_w[l, o, c, k]
    w_in = jnp.transpose(in_w, (0, 1, 3, 2)).reshape(nl, 2 * C, K * C)
    # Per-layer conditioning 1x1 conv: (nl, 2C, G).
    w_cond = cond_w[:, :, 0].reshape(nl, 2 * C, G)
    # Fused pre-activation weight: z = [w_cond | w_in] @ [g ; taps].
    w_zin = jnp.concatenate([w_cond, w_in], axis=-1)           # (nl, 2C, G+K*C)
    # Pre-activation bias: conditioning bias + in_layer bias folded together.
    b_z = (cond_b + in_b.reshape(-1)).reshape(nl, 2 * C, 1)

    # Fused res/skip 1x1 conv: rows [:C] res, rows [C:] skip.
    # Last layer has skip only -> zero res half (keeps the packing uniform).
    w_rs_l, b_rs_l = [], []
    for i in range(nl):
        w, b = rs_w[i][:, :, 0], rs_b[i]
        if i == nl - 1:
            w = jnp.concatenate([jnp.zeros((C, C), w.dtype), w], axis=0)
            b = jnp.concatenate([jnp.zeros((C,), b.dtype), b])
        w_rs_l.append(w)
        b_rs_l.append(b)
    w_rs = jnp.stack(w_rs_l)                                   # (nl, 2C, C)
    b_rs = jnp.stack(b_rs_l).reshape(nl, 2 * C, 1)

    # MXU inputs in compute_dtype (bf16 default); biases / residual path f32.
    w_zin = w_zin.astype(compute_dtype)
    w_rs = w_rs.astype(compute_dtype)
    b_z = b_z.astype(jnp.float32)
    b_rs = b_rs.astype(jnp.float32)
    g_in = g_ngt.astype(compute_dtype)

    # Per-layer dilations, read in-kernel via SMEM scalar prefetch.
    dilations = jnp.asarray([dilation_rate ** i for i in range(nl)], jnp.int32)

    if vmem_limit_bytes is None:
        vmem_limit_bytes = _default_vmem_limit_bytes()

    kernel = functools.partial(
        _wavenet_kernel,
        n_layers=nl, kernel_size=K, dilation_rate=dilation_rate, hidden=C)

    grid_spec = pltpu.PrefetchScalarGridSpec(
        num_scalar_prefetch=1,
        grid=(B, nl),                                   # layer axis innermost
        in_specs=[
            pl.BlockSpec((1, C, T), lambda b, l, dil: (b, 0, 0)),           # x
            pl.BlockSpec((1, 1, T), lambda b, l, dil: (b, 0, 0)),           # mask
            pl.BlockSpec((1, G, T), lambda b, l, dil: (b, 0, 0)),           # g
            pl.BlockSpec((1, 2 * C, G + K * C), lambda b, l, dil: (l, 0, 0)),  # w_zin
            pl.BlockSpec((1, 2 * C, 1), lambda b, l, dil: (l, 0, 0)),          # b_z
            pl.BlockSpec((1, 2 * C, C), lambda b, l, dil: (l, 0, 0)),          # w_rs
            pl.BlockSpec((1, 2 * C, 1), lambda b, l, dil: (l, 0, 0)),          # b_rs
        ],
        out_specs=pl.BlockSpec((1, C, T), lambda b, l, dil: (b, 0, 0)),
        scratch_shapes=[pltpu.VMEM((C, T), jnp.float32)],   # residual state
    )

    out = pl.pallas_call(
        kernel,
        out_shape=jax.ShapeDtypeStruct((B, C, T), jnp.float32),
        grid_spec=grid_spec,
        compiler_params=pltpu.CompilerParams(
            dimension_semantics=("parallel", "arbitrary"),
            vmem_limit_bytes=vmem_limit_bytes),
    )(dilations, x_nct, mask_n1t, g_in, w_zin, b_z, w_rs, b_rs)

    return out                                              # (B, C, T) f32


# ----------------------------------------------------------------------------
# Pure-JAX reference (PyTorch NCT layout, f32), for correctness checking.
# ----------------------------------------------------------------------------
def wavenet_ref(x, x_mask, g, params, *, hidden, kernel_size, dilation_rate, n_layers):
    C, K, nl = hidden, kernel_size, n_layers
    g_cond = jnp.einsum("bgt,og->bot", g, params["cond_w"][:, :, 0]) \
        + params["cond_b"][None, :, None]
    output = jnp.zeros_like(x)
    for i in range(nl):
        d = dilation_rate ** i
        pad = (K * d - d) // 2
        x_in = lax.conv_general_dilated(
            x, params["in_w"][i], window_strides=(1,), padding=[(pad, pad)],
            rhs_dilation=(d,), dimension_numbers=("NCH", "OIH", "NCH"),
        ) + params["in_b"][i][None, :, None]
        z = x_in + g_cond[:, i * 2 * C:(i + 1) * 2 * C, :]
        acts = jnp.tanh(z[:, :C]) * jax.nn.sigmoid(z[:, C:])
        rs = jnp.einsum("bct,oc->bot", acts, params["rs_w"][i][:, :, 0]) \
            + params["rs_b"][i][None, :, None]
        if i < nl - 1:
            x = (x + rs[:, :C]) * x_mask
            output = output + rs[:, C:]
        else:
            output = output + rs
    return output * x_mask


# ----------------------------------------------------------------------------
if __name__ == "__main__":
    hidden_channels = 32
    kernel_size = 3
    n_layers = 4
    gin_channels = 16
    B, T = 2, 128

    key = jax.random.PRNGKey(0)
    keys = jax.random.split(key, 16)

    # Deterministic synthetic parameters (PyTorch Conv1d weight layout (O, I, K)).
    params = {
        "in_w": 0.1 * jax.random.normal(
            keys[0], (n_layers, 2 * hidden_channels, hidden_channels, kernel_size), jnp.float32),
        "in_b": 0.05 * jax.random.normal(keys[1], (n_layers, 2 * hidden_channels), jnp.float32),
        "cond_w": 0.1 * jax.random.normal(
            keys[2], (2 * hidden_channels * n_layers, gin_channels, 1), jnp.float32),
        "cond_b": 0.05 * jax.random.normal(keys[3], (2 * hidden_channels * n_layers,), jnp.float32),
        "rs_w": [
            0.1 * jax.random.normal(
                keys[4 + i],
                (hidden_channels if i == n_layers - 1 else 2 * hidden_channels, hidden_channels, 1),
                jnp.float32)
            for i in range(n_layers)
        ],
        "rs_b": [
            0.05 * jax.random.normal(
                keys[8 + i],
                (hidden_channels if i == n_layers - 1 else 2 * hidden_channels,),
                jnp.float32)
            for i in range(n_layers)
        ],
    }

    # Inputs (PyTorch layout).
    x = jax.random.normal(keys[12], (B, hidden_channels, T), jnp.float32)
    g = jax.random.normal(keys[13], (B, gin_channels, T), jnp.float32)
    lengths = jnp.array([T, T - 40])
    t_idx = jnp.arange(T)[None, None, :]
    x_mask = (t_idx < lengths[:, None, None]).astype(jnp.float32)   # (B, 1, T)

    # Exercise both the static-roll (dilation_rate=1) and dynamic-roll paths.
    for dilation_rate in (1, 2):
        common = dict(hidden=hidden_channels, kernel_size=kernel_size,
                      dilation_rate=dilation_rate, n_layers=n_layers)

        ref = jax.block_until_ready(wavenet_ref(x, x_mask, g, params, **common))
        ref_np = np.asarray(ref)

        # f32 kernel: exact check against the f32 reference.
        out_f32 = jax.block_until_ready(
            wavenet_pallas(x, x_mask, g, params, gin=gin_channels,
                           compute_dtype=jnp.float32, **common))
        np.testing.assert_allclose(np.asarray(out_f32), ref_np, rtol=1e-3, atol=1e-3)

        # bf16 (default, MXU-native) kernel: looser sanity check vs f32 reference.
        out_bf16 = jax.block_until_ready(
            wavenet_pallas(x, x_mask, g, params, gin=gin_channels,
                           compute_dtype=jnp.bfloat16, **common))
        rel_l2 = np.linalg.norm(np.asarray(out_bf16) - ref_np) / np.linalg.norm(ref_np)
        assert rel_l2 < 2e-2, f"bf16 relative L2 error too large (d={dilation_rate}): {rel_l2}"

        assert out_f32.shape == (B, hidden_channels, T)
        assert out_bf16.shape == (B, hidden_channels, T)

    print("KERNEL_OK")
</pallas_src>

<mosaic_0001>
module attributes {stable_mosaic.version = 11 : i64} {
  func.func @_wavenet_kernel(%arg0: i32, %arg1: i32, %arg2: memref<4xi32, #tpu.memory_space<smem>>, %arg3: memref<1x32x128xf32, #tpu.memory_space<vmem>>, %arg4: memref<1x1x128xf32, #tpu.memory_space<vmem>>, %arg5: memref<1x16x128xf32, #tpu.memory_space<vmem>>, %arg6: memref<1x64x112xf32, #tpu.memory_space<vmem>>, %arg7: memref<1x64x1xf32, #tpu.memory_space<vmem>>, %arg8: memref<1x64x32xf32, #tpu.memory_space<vmem>>, %arg9: memref<1x64x1xf32, #tpu.memory_space<vmem>>, %arg10: memref<1x32x128xf32, #tpu.memory_space<vmem>>, %arg11: memref<32x128xf32, #tpu.memory_space<vmem>>) attributes {dimension_semantics = [#tpu.dimension_semantics<parallel>, #tpu.dimension_semantics<arbitrary>], iteration_bounds = array<i64: 2, 4>, scalar_prefetch = 1 : i64, scratch_operands = 1 : i64, tpu.core_type = #tpu.core_type<tc>, window_params = [{transform_indices = @transform_0, window_bounds = array<i64: 1, 32, 128>}, {transform_indices = @transform_1, window_bounds = array<i64: 1, 1, 128>}, {transform_indices = @transform_2, window_bounds = array<i64: 1, 16, 128>}, {transform_indices = @transform_3, window_bounds = array<i64: 1, 64, 112>}, {transform_indices = @transform_4, window_bounds = array<i64: 1, 64, 1>}, {transform_indices = @transform_5, window_bounds = array<i64: 1, 64, 32>}, {transform_indices = @transform_6, window_bounds = array<i64: 1, 64, 1>}, {transform_indices = @transform_7, window_bounds = array<i64: 1, 32, 128>}]} {
    %c0_i32 = arith.constant 0 : i32
    %0 = arith.cmpi eq, %arg1, %c0_i32 : i32
    %1 = arith.extui %0 : i1 to i32
    %c0_i32_0 = arith.constant 0 : i32
    %2 = arith.cmpi ne, %1, %c0_i32_0 : i32
    scf.if %2 {
      %c0_41 = arith.constant 0 : index
      %c0_42 = arith.constant 0 : index
      %c0_43 = arith.constant 0 : index
      %76 = vector.load %arg3[%c0_41, %c0_42, %c0_43] : memref<1x32x128xf32, #tpu.memory_space<vmem>>, vector<1x32x128xf32>
      %77 = vector.shape_cast %76 : vector<1x32x128xf32> to vector<32x128xf32>
      %c0_44 = arith.constant 0 : index
      %c0_45 = arith.constant 0 : index
      %78 = vector.load %arg11[%c0_44, %c0_45] : memref<32x128xf32, #tpu.memory_space<vmem>>, vector<32x128xf32>
      tpu.vector_store %arg11[%c0_44, %c0_45], %77 {strides = array<i32>} : memref<32x128xf32, #tpu.memory_space<vmem>>, vector<32x128xf32>,
      %cst_46 = arith.constant 0.000000e+00 : f32
      %79 = vector.broadcast %cst_46 : f32 to vector<32x128xf32>
      %c0_47 = arith.constant 0 : index
      %c0_48 = arith.constant 0 : index
      %c0_49 = arith.constant 0 : index
      %80 = vector.load %arg10[%c0_47, %c0_48, %c0_49] : memref<1x32x128xf32, #tpu.memory_space<vmem>>, vector<1x32x128xf32>
      %81 = vector.shape_cast %80 : vector<1x32x128xf32> to vector<32x128xf32>
      %82 = vector.shape_cast %79 : vector<32x128xf32> to vector<1x32x128xf32>
      tpu.vector_store %arg10[%c0_47, %c0_48, %c0_49], %82 {strides = array<i32>} : memref<1x32x128xf32, #tpu.memory_space<vmem>>, vector<1x32x128xf32>,
    } else {
    }
    %c0 = arith.constant 0 : index
    %c0_1 = arith.constant 0 : index
    %c0_2 = arith.constant 0 : index
    %3 = vector.load %arg4[%c0, %c0_1, %c0_2] : memref<1x1x128xf32, #tpu.memory_space<vmem>>, vector<1x1x128xf32>
    %4 = vector.shape_cast %3 : vector<1x1x128xf32> to vector<1x128xf32>
    %c0_3 = arith.constant 0 : index
    %c0_4 = arith.constant 0 : index
    %c0_5 = arith.constant 0 : index
    %5 = vector.load %arg5[%c0_3, %c0_4, %c0_5] : memref<1x16x128xf32, #tpu.memory_space<vmem>>, vector<1x16x128xf32>
    %6 = vector.shape_cast %5 : vector<1x16x128xf32> to vector<16x128xf32>
    %c0_6 = arith.constant 0 : index
    %c0_7 = arith.constant 0 : index
    %7 = vector.load %arg11[%c0_6, %c0_7] : memref<32x128xf32, #tpu.memory_space<vmem>>, vector<32x128xf32>
    %8 = tpu.iota {dimensions = array<i32: 1>} : vector<1x128xi32>
    %c1_i32 = arith.constant 1 : i32
    %9 = tpu.dynamic_rotate %7 by %c1_i32 dim 1 : vector<32x128xf32>, i32 -> vector<32x128xf32>
    %c-1_i32 = arith.constant -1 : i32
    %10 = vector.broadcast %c-1_i32 : i32 to vector<1x128xi32>
    %11 = arith.addi %8, %10 : vector<1x128xi32>
    %c0_i32_8 = arith.constant 0 : i32
    %12 = vector.broadcast %c0_i32_8 : i32 to vector<1x128xi32>
    %13 = arith.cmpi sge, %11, %12 : vector<1x128xi32>
    %c-1_i32_9 = arith.constant -1 : i32
    %14 = vector.broadcast %c-1_i32_9 : i32 to vector<1x128xi32>
    %15 = arith.addi %8, %14 : vector<1x128xi32>
    %c128_i32 = arith.constant 128 : i32
    %16 = vector.broadcast %c128_i32 : i32 to vector<1x128xi32>
    %17 = arith.cmpi slt, %15, %16 : vector<1x128xi32>
    %18 = arith.andi %13, %17 : vector<1x128xi1>
    %cst = arith.constant 0.000000e+00 : f32
    %19 = vector.broadcast %cst : f32 to vector<32x128xf32>
    %20 = vector.shape_cast %18 : vector<1x128xi1> to vector<1x128xi1>
    %21 = vector.broadcast %20 : vector<1x128xi1> to vector<32x128xi1>
    %22 = arith.select %21, %9, %19 : vector<32x128xi1>, vector<32x128xf32>
    %c127_i32 = arith.constant 127 : i32
    %23 = tpu.dynamic_rotate %7 by %c127_i32 dim 1 : vector<32x128xf32>, i32 -> vector<32x128xf32>
    %c1_i32_10 = arith.constant 1 : i32
    %24 = vector.broadcast %c1_i32_10 : i32 to vector<1x128xi32>
    %25 = arith.addi %8, %24 : vector<1x128xi32>
    %c0_i32_11 = arith.constant 0 : i32
    %26 = vector.broadcast %c0_i32_11 : i32 to vector<1x128xi32>
    %27 = arith.cmpi sge, %25, %26 : vector<1x128xi32>
    %c1_i32_12 = arith.constant 1 : i32
    %28 = vector.broadcast %c1_i32_12 : i32 to vector<1x128xi32>
    %29 = arith.addi %8, %28 : vector<1x128xi32>
    %c128_i32_13 = arith.constant 128 : i32
    %30 = vector.broadcast %c128_i32_13 : i32 to vector<1x128xi32>
    %31 = arith.cmpi slt, %29, %30 : vector<1x128xi32>
    %32 = arith.andi %27, %31 : vector<1x128xi1>
    %cst_14 = arith.constant 0.000000e+00 : f32
    %33 = vector.broadcast %cst_14 : f32 to vector<32x128xf32>
    %34 = vector.shape_cast %32 : vector<1x128xi1> to vector<1x128xi1>
    %35 = vector.broadcast %34 : vector<1x128xi1> to vector<32x128xi1>
    %36 = arith.select %35, %23, %33 : vector<32x128xi1>, vector<32x128xf32>
    %37 = tpu.concatenate %6, %22, %7, %36 in 0 : vector<16x128xf32>, vector<32x128xf32>, vector<32x128xf32>, vector<32x128xf32> -> vector<112x128xf32>
    %c0_15 = arith.constant 0 : index
    %c0_16 = arith.constant 0 : index
    %c0_17 = arith.constant 0 : index
    %38 = vector.load %arg6[%c0_15, %c0_16, %c0_17] : memref<1x64x112xf32, #tpu.memory_space<vmem>>, vector<1x64x112xf32>
    %39 = vector.shape_cast %38 : vector<1x64x112xf32> to vector<64x112xf32>
    %cst_18 = arith.constant dense<0.000000e+00> : vector<64x128xf32>
    %40 = tpu.matmul %39, %37, %cst_18 {dimension_numbers = #tpu.dot_dimension_numbers<[1], [0], [0], [1], [0, 0, 1, 1], [], []>} : vector<64x112xf32>, vector<112x128xf32>, vector<64x128xf32> -> vector<64x128xf32>
    %c0_19 = arith.constant 0 : index
    %c0_20 = arith.constant 0 : index
    %c0_21 = arith.constant 0 : index
    %41 = vector.load %arg7[%c0_19, %c0_20, %c0_21] : memref<1x64x1xf32, #tpu.memory_space<vmem>>, vector<1x64x1xf32>
    %42 = vector.shape_cast %41 : vector<1x64x1xf32> to vector<64x1xf32>
    %43 = vector.broadcast %42 : vector<64x1xf32> to vector<64x128xf32>
    %44 = arith.addf %40, %43 : vector<64x128xf32>
    %45 = vector.extract_strided_slice %44 {offsets = [0, 0], sizes = [32, 128], strides = [1, 1]} : vector<64x128xf32> to vector<32x128xf32>
    %46 = math.tanh %45 : vector<32x128xf32>
    %47 = vector.extract_strided_slice %44 {offsets = [32, 0], sizes = [32, 128], strides = [1, 1]} : vector<64x128xf32> to vector<32x128xf32>
    %cst_22 = arith.constant 5.000000e-01 : f32
    %48 = vector.broadcast %cst_22 : f32 to vector<32x128xf32>
    %49 = arith.mulf %48, %47 : vector<32x128xf32>
    %50 = math.tanh %49 : vector<32x128xf32>
    %cst_23 = arith.constant 1.000000e+00 : f32
    %51 = vector.broadcast %cst_23 : f32 to vector<32x128xf32>
    %52 = arith.addf %50, %51 : vector<32x128xf32>
    %cst_24 = arith.constant 5.000000e-01 : f32
    %53 = vector.broadcast %cst_24 : f32 to vector<32x128xf32>
    %54 = arith.mulf %53, %52 : vector<32x128xf32>
    %55 = arith.mulf %46, %54 : vector<32x128xf32>
    %c0_25 = arith.constant 0 : index
    %c0_26 = arith.constant 0 : index
    %c0_27 = arith.constant 0 : index
    %56 = vector.load %arg8[%c0_25, %c0_26, %c0_27] : memref<1x64x32xf32, #tpu.memory_space<vmem>>, vector<1x64x32xf32>
    %57 = vector.shape_cast %56 : vector<1x64x32xf32> to vector<64x32xf32>
    %cst_28 = arith.constant dense<0.000000e+00> : vector<64x128xf32>
    %58 = tpu.matmul %57, %55, %cst_28 {dimension_numbers = #tpu.dot_dimension_numbers<[1], [0], [0], [1], [0, 0, 1, 1], [], []>} : vector<64x32xf32>, vector<32x128xf32>, vector<64x128xf32> -> vector<64x128xf32>
    %c0_29 = arith.constant 0 : index
    %c0_30 = arith.constant 0 : index
    %c0_31 = arith.constant 0 : index
    %59 = vector.load %arg9[%c0_29, %c0_30, %c0_31] : memref<1x64x1xf32, #tpu.memory_space<vmem>>, vector<1x64x1xf32>
    %60 = vector.shape_cast %59 : vector<1x64x1xf32> to vector<64x1xf32>
    %61 = vector.broadcast %60 : vector<64x1xf32> to vector<64x128xf32>
    %62 = arith.addf %58, %61 : vector<64x128xf32>
    %c0_32 = arith.constant 0 : index
    %c0_33 = arith.constant 0 : index
    %c0_34 = arith.constant 0 : index
    %63 = vector.load %arg10[%c0_32, %c0_33, %c0_34] : memref<1x32x128xf32, #tpu.memory_space<vmem>>, vector<1x32x128xf32>
    %64 = vector.shape_cast %63 : vector<1x32x128xf32> to vector<32x128xf32>
    %65 = vector.extract_strided_slice %62 {offsets = [32, 0], sizes = [32, 128], strides = [1, 1]} : vector<64x128xf32> to vector<32x128xf32>
    %66 = arith.addf %64, %65 : vector<32x128xf32>
    %c0_35 = arith.constant 0 : index
    %c0_36 = arith.constant 0 : index
    %c0_37 = arith.constant 0 : index
    %67 = vector.load %arg10[%c0_35, %c0_36, %c0_37] : memref<1x32x128xf32, #tpu.memory_space<vmem>>, vector<1x32x128xf32>
    %68 = vector.shape_cast %67 : vector<1x32x128xf32> to vector<32x128xf32>
    %69 = vector.shape_cast %66 : vector<32x128xf32> to vector<1x32x128xf32>
    tpu.vector_store %arg10[%c0_35, %c0_36, %c0_37], %69 {strides = array<i32>} : memref<1x32x128xf32, #tpu.memory_space<vmem>>, vector<1x32x128xf32>,
    %c3_i32 = arith.constant 3 : i32
    %70 = arith.cmpi slt, %arg1, %c3_i32 : i32
    %71 = arith.extui %70 : i1 to i32
    %c0_i32_38 = arith.constant 0 : i32
    %72 = arith.cmpi ne, %71, %c0_i32_38 : i32
    scf.if %72 {
      %76 = vector.extract_strided_slice %62 {offsets = [0, 0], sizes = [32, 128], strides = [1, 1]} : vector<64x128xf32> to vector<32x128xf32>
      %77 = arith.addf %7, %76 : vector<32x128xf32>
      %78 = vector.broadcast %4 : vector<1x128xf32> to vector<32x128xf32>
      %79 = arith.mulf %77, %78 : vector<32x128xf32>
      %c0_41 = arith.constant 0 : index
      %c0_42 = arith.constant 0 : index
      %80 = vector.load %arg11[%c0_41, %c0_42] : memref<32x128xf32, #tpu.memory_space<vmem>>, vector<32x128xf32>
      tpu.vector_store %arg11[%c0_41, %c0_42], %79 {strides = array<i32>} : memref<32x128xf32, #tpu.memory_space<vmem>>, vector<32x128xf32>,
    } else {
    }
    %c3_i32_39 = arith.constant 3 : i32
    %73 = arith.cmpi eq, %arg1, %c3_i32_39 : i32
    %74 = arith.extui %73 : i1 to i32
    %c0_i32_40 = arith.constant 0 : i32
    %75 = arith.cmpi ne, %74, %c0_i32_40 : i32
    scf.if %75 {
      %c0_41 = arith.constant 0 : index
      %c0_42 = arith.constant 0 : index
      %c0_43 = arith.constant 0 : index
      %76 = vector.load %arg10[%c0_41, %c0_42, %c0_43] : memref<1x32x128xf32, #tpu.memory_space<vmem>>, vector<1x32x128xf32>
      %77 = vector.shape_cast %76 : vector<1x32x128xf32> to vector<32x128xf32>
      %78 = vector.broadcast %4 : vector<1x128xf32> to vector<32x128xf32>
      %79 = arith.mulf %77, %78 : vector<32x128xf32>
      %c0_44 = arith.constant 0 : index
      %c0_45 = arith.constant 0 : index
      %c0_46 = arith.constant 0 : index
      %80 = vector.load %arg10[%c0_44, %c0_45, %c0_46] : memref<1x32x128xf32, #tpu.memory_space<vmem>>, vector<1x32x128xf32>
      %81 = vector.shape_cast %80 : vector<1x32x128xf32> to vector<32x128xf32>
      %82 = vector.shape_cast %79 : vector<32x128xf32> to vector<1x32x128xf32>
      tpu.vector_store %arg10[%c0_44, %c0_45, %c0_46], %82 {strides = array<i32>} : memref<1x32x128xf32, #tpu.memory_space<vmem>>, vector<1x32x128xf32>,
    } else {
    }
    return
  }
  func.func @transform_0(%arg0: i32, %arg1: i32, %arg2: memref<4xi32, #tpu.memory_space<smem>>) -> (i32, i32, i32) {
    %c0_i32 = arith.constant 0 : i32
    %c0_i32_0 = arith.constant 0 : i32
    %c0_i32_1 = arith.constant 0 : i32
    return %arg0, %c0_i32, %c0_i32_0 : i32, i32, i32
  }
  func.func @transform_1(%arg0: i32, %arg1: i32, %arg2: memref<4xi32, #tpu.memory_space<smem>>) -> (i32, i32, i32) {
    %c0_i32 = arith.constant 0 : i32
    %c0_i32_0 = arith.constant 0 : i32
    %c0_i32_1 = arith.constant 0 : i32
    return %arg0, %c0_i32, %c0_i32_0 : i32, i32, i32
  }
  func.func @transform_2(%arg0: i32, %arg1: i32, %arg2: memref<4xi32, #tpu.memory_space<smem>>) -> (i32, i32, i32) {
    %c0_i32 = arith.constant 0 : i32
    %c0_i32_0 = arith.constant 0 : i32
    %c0_i32_1 = arith.constant 0 : i32
    return %arg0, %c0_i32, %c0_i32_0 : i32, i32, i32
  }
  func.func @transform_3(%arg0: i32, %arg1: i32, %arg2: memref<4xi32, #tpu.memory_space<smem>>) -> (i32, i32, i32) {
    %c0_i32 = arith.constant 0 : i32
    %c0_i32_0 = arith.constant 0 : i32
    %c0_i32_1 = arith.constant 0 : i32
    return %arg1, %c0_i32, %c0_i32_0 : i32, i32, i32
  }
  func.func @transform_4(%arg0: i32, %arg1: i32, %arg2: memref<4xi32, #tpu.memory_space<smem>>) -> (i32, i32, i32) {
    %c0_i32 = arith.constant 0 : i32
    %c0_i32_0 = arith.constant 0 : i32
    %c0_i32_1 = arith.constant 0 : i32
    return %arg1, %c0_i32, %c0_i32_0 : i32, i32, i32
  }
  func.func @transform_5(%arg0: i32, %arg1: i32, %arg2: memref<4xi32, #tpu.memory_space<smem>>) -> (i32, i32, i32) {
    %c0_i32 = arith.constant 0 : i32
    %c0_i32_0 = arith.constant 0 : i32
    %c0_i32_1 = arith.constant 0 : i32
    return %arg1, %c0_i32, %c0_i32_0 : i32, i32, i32
  }
  func.func @transform_6(%arg0: i32, %arg1: i32, %arg2: memref<4xi32, #tpu.memory_space<smem>>) -> (i32, i32, i32) {
    %c0_i32 = arith.constant 0 : i32
    %c0_i32_0 = arith.constant 0 : i32
    %c0_i32_1 = arith.constant 0 : i32
    return %arg1, %c0_i32, %c0_i32_0 : i32, i32, i32
  }
  func.func @transform_7(%arg0: i32, %arg1: i32, %arg2: memref<4xi32, #tpu.memory_space<smem>>) -> (i32, i32, i32) {
    %c0_i32 = arith.constant 0 : i32
    %c0_i32_0 = arith.constant 0 : i32
    %c0_i32_1 = arith.constant 0 : i32
    return %arg0, %c0_i32, %c0_i32_0 : i32, i32, i32
  }
}

</mosaic_0001>

<llo_original>
// kernel: tpu_custom_call.1
$region0: #{tpu_custom_call.1}
  #allocation0 [shape = 'u32[]', space=smem, size = 0x4, offset = 0x4, fixed_abs, tag = 'smem constant byte address 0x4 - core index']
  #allocation1 [shape = 'u32[144,128]{1,0:T(1,128)}', space=vmem, size = 0x12000, scoped, tag = 'internal scratch']
  #allocation2 [shape = 'f32[32,128]{1,0:T(8,128)}', space=vmem, size = 0x4000, scoped, tag = 'scratch operand']
  #allocation3 [shape = 's32[1]{0}', space=sflag, size = 0x4, scoped, tag = 'scoped memory for tpu_custom_call.1']
  #allocation4 [shape = 'u8[512]{0}', space=smem, size = 0x200, scoped, tag = 'prefetched SMEM operand 0']
  %s0 = inlined_call_operand.vmem [shape: s32[4], index: 0, kind: input, shape index: {}]
  %s1 = inlined_call_operand.vmem [shape: f32[2,32,128], index: 1, kind: input, shape index: {}]
  %s2 = inlined_call_operand.vmem [shape: f32[2,1,128], index: 2, kind: input, shape index: {}]
  %s3 = inlined_call_operand.vmem [shape: f32[2,16,128], index: 3, kind: input, shape index: {}]
  %s4 = inlined_call_operand.vmem [shape: f32[4,64,112], index: 4, kind: input, shape index: {}]
  %s5 = inlined_call_operand.vmem [shape: f32[4,64,1], index: 5, kind: input, shape index: {}]
  %s6 = inlined_call_operand.vmem [shape: f32[4,64,32], index: 6, kind: input, shape index: {}]
  %s7 = inlined_call_operand.vmem [shape: f32[4,64,1], index: 7, kind: input, shape index: {}]
  %s8 = inlined_call_operand.hbm [shape: f32[2,32,128], index: 8, kind: output, shape index: {}]
  %s9 = sld [smem:[#allocation0]]
  $region73: #{tpu_custom_call.1} parent=0
    _
  %s11 = ssub.s32 1, %s9
  %s12 = scalar_select 0, %s11, %s9
  %s13 = sshll.u32 %s0, 4
  %s14 = int_to_ptr.vmem [resolvable:$true] %s13
  %16 = dma.vmem_to_smem %s14, 16, [#allocation4], [#allocation3]
  %17 = dma.done [#allocation3], 16
  %18 = sfence
  $region1: #{tpu_custom_call.1} parent=0
    #allocation5 [shape = 'u8[32768]{0}', space=vmem, size = 0x8000, scoped, tag = 'output window, operand 0']
    #allocation6 [shape = 's32[2]{0}', space=sflag, size = 0x8, scoped, tag = 'scoped memory for tpu_custom_call.1']
    %19 = vsyncpa [#allocation6], 0
    %s20 = scalar_lea.sflag [#allocation6], 1
    %21 = vsyncpa %s20, 0
    loop: start=0, step=1, limit=10
    $region2: #{tpu_custom_call.1} parent=1 // loop_pre_header
      _
    $region3: #{tpu_custom_call.1} parent=1 // loop_header
      %s23 = sphi 0, %s27
      %p24 = scmp.ge.s32.totalorder %s23, 10
      %s30 = sphi 0, %s42
      %s31 = sphi 0, %s38
      %s32 = sphi 0, %s30
      %s33 = sphi 0, %s31
      %s34 = sphi 0, %s32
      %s35 = sphi 0, %s33
      %s45 = sphi 0, %s47
      %s48 = sphi 0, %s45
      %s49 = sphi 0, %s48
      %s65 = sphi 0, %s49
      %s71 = sphi 0, %s73
      %s74 = sphi 0, %s71
      %s75 = sphi 0, %s74
      %s91 = sphi 0, %s75
      %s97 = sphi 0, %s99
      %s100 = sphi 0, %s97
      %s101 = sphi 0, %s100
      %s117 = sphi 0, %s101
      %s123 = sphi 0, %s125
      %s126 = sphi 0, %s123
      %s127 = sphi 0, %s126
      %s143 = sphi 0, %s127
      %s149 = sphi 0, %s151
      %s152 = sphi 0, %s149
      %s153 = sphi 0, %s152
      %s169 = sphi 0, %s153
      %s175 = sphi 0, %s177
      %s178 = sphi 0, %s175
      %s179 = sphi 0, %s178
      %s195 = sphi 0, %s179
      %s201 = sphi 0, %s203
      %s204 = sphi 0, %s201
      %s205 = sphi 0, %s204
      %s221 = sphi 0, %s205
      %s227 = sphi 0, %s229
      %s230 = sphi 0, %s227
      %s231 = sphi 0, %s230
      %s247 = sphi 0, %s231
    $region4: #{tpu_custom_call.1} parent=1 // loop_header_branch
      %26 = sbr.rel (%p24) target = $region8
    $region5: #{tpu_custom_call.1} parent=1 // loop_body
      %s28 = ssub.s32 %s23, 1
      %s29 = ssub.s32 %s23, 2
      %s36 = sadd.s32 1, %s31
      %p37 = scmp.ge.s32.totalorder %s36, 4
      %s38 = scalar_select %p37, 0, %s36
      %s39 = sadd.s32 1, %s30
      %s40 = scalar_select %p37, %s39, %s30
      %p41 = scmp.ge.s32.totalorder %s40, 2
      %s42 = scalar_select %p41, 0, %s40
      %s43 = ssub.s32 %s30, %s42
      %p44 = scmp.eq.s32.totalorder %s43, 0
      %s46 = sadd.s32 %s45, 1
      %s47 = scalar_select %p44, %s45, %s46
      %p50 = pneg %p44
      %p51 = scmp.eq.s32.totalorder %s23, 7
      %p52 = por %p50, %p51
      %p53 = scmp.ne.s32.totalorder %s45, %s48
      %p54 = scmp.eq.s32.totalorder %s23, 0
      %p55 = por %p53, %p54
      %p56 = scmp.ne.s32.totalorder %s45, %s48
      %p57 = scmp.eq.s32.totalorder %s28, 7
      %p58 = por %p56, %p57
      %p59 = scmp.ne.s32.totalorder %s48, %s49
      %p60 = scmp.eq.s32.totalorder %s28, 0
      %p61 = por %p59, %p60
      %p62 = scmp.ne.s32.totalorder %s48, %s49
      %p63 = scmp.eq.s32.totalorder %s29, 7
      %p64 = por %p62, %p63
      %p66 = scmp.ne.s32.totalorder %s49, %s65
      %p67 = scmp.eq.s32.totalorder %s29, 0
      %p68 = por %p66, %p67
      %s69 = ssub.s32 %s30, %s42
      %p70 = scmp.eq.s32.totalorder %s69, 0
      %s72 = sadd.s32 %s71, 1
      %s73 = scalar_select %p70, %s71, %s72
      %p76 = pneg %p70
      %p77 = scmp.eq.s32.totalorder %s23, 7
      %p78 = por %p76, %p77
      %p79 = scmp.ne.s32.totalorder %s71, %s74
      %p80 = scmp.eq.s32.totalorder %s23, 0
      %p81 = por %p79, %p80
      %p82 = scmp.ne.s32.totalorder %s71, %s74
      %p83 = scmp.eq.s32.totalorder %s28, 7
      %p84 = por %p82, %p83
      %p85 = scmp.ne.s32.totalorder %s74, %s75
      %p86 = scmp.eq.s32.totalorder %s28, 0
      %p87 = por %p85, %p86
      %p88 = scmp.ne.s32.totalorder %s74, %s75
      %p89 = scmp.eq.s32.totalorder %s29, 7
      %p90 = por %p88, %p89
      %p92 = scmp.ne.s32.totalorder %s75, %s91
      %p93 = scmp.eq.s32.totalorder %s29, 0
      %p94 = por %p92, %p93
      %s95 = ssub.s32 %s30, %s42
      %p96 = scmp.eq.s32.totalorder %s95, 0
      %s98 = sadd.s32 %s97, 1
      %s99 = scalar_select %p96, %s97, %s98
      %p102 = pneg %p96
      %p103 = scmp.eq.s32.totalorder %s23, 7
      %p104 = por %p102, %p103
      %p105 = scmp.ne.s32.totalorder %s97, %s100
      %p106 = scmp.eq.s32.totalorder %s23, 0
      %p107 = por %p105, %p106
      %p108 = scmp.ne.s32.totalorder %s97, %s100
      %p109 = scmp.eq.s32.totalorder %s28, 7
      %p110 = por %p108, %p109
      %p111 = scmp.ne.s32.totalorder %s100, %s101
      %p112 = scmp.eq.s32.totalorder %s28, 0
      %p113 = por %p111, %p112
      %p114 = scmp.ne.s32.totalorder %s100, %s101
      %p115 = scmp.eq.s32.totalorder %s29, 7
      %p116 = por %p114, %p115
      %p118 = scmp.ne.s32.totalorder %s101, %s117
      %p119 = scmp.eq.s32.totalorder %s29, 0
      %p120 = por %p118, %p119
      %s121 = ssub.s32 %s31, %s38
      %p122 = scmp.eq.s32.totalorder %s121, 0
      %s124 = sadd.s32 %s123, 1
      %s125 = scalar_select %p122, %s123, %s124
      %p128 = pneg %p122
      %p129 = scmp.eq.s32.totalorder %s23, 7
      %p130 = por %p128, %p129
      %p131 = scmp.ne.s32.totalorder %s123, %s126
      %p132 = scmp.eq.s32.totalorder %s23, 0
      %p133 = por %p131, %p132
      %p134 = scmp.ne.s32.totalorder %s123, %s126
      %p135 = scmp.eq.s32.totalorder %s28, 7
      %p136 = por %p134, %p135
      %p137 = scmp.ne.s32.totalorder %s126, %s127
      %p138 = scmp.eq.s32.totalorder %s28, 0
      %p139 = por %p137, %p138
      %p140 = scmp.ne.s32.totalorder %s126, %s127
      %p141 = scmp.eq.s32.totalorder %s29, 7
      %p142 = por %p140, %p141
      %p144 = scmp.ne.s32.totalorder %s127, %s143
      %p145 = scmp.eq.s32.totalorder %s29, 0
      %p146 = por %p144, %p145
      %s147 = ssub.s32 %s31, %s38
      %p148 = scmp.eq.s32.totalorder %s147, 0
      %s150 = sadd.s32 %s149, 1
      %s151 = scalar_select %p148, %s149, %s150
      %p154 = pneg %p148
      %p155 = scmp.eq.s32.totalorder %s23, 7
      %p156 = por %p154, %p155
      %p157 = scmp.ne.s32.totalorder %s149, %s152
      %p158 = scmp.eq.s32.totalorder %s23, 0
      %p159 = por %p157, %p158
      %p160 = scmp.ne.s32.totalorder %s149, %s152
      %p161 = scmp.eq.s32.totalorder %s28, 7
      %p162 = por %p160, %p161
      %p163 = scmp.ne.s32.totalorder %s152, %s153
      %p164 = scmp.eq.s32.totalorder %s28, 0
      %p165 = por %p163, %p164
      %p166 = scmp.ne.s32.totalorder %s152, %s153
      %p167 = scmp.eq.s32.totalorder %s29, 7
      %p168 = por %p166, %p167
      %p170 = scmp.ne.s32.totalorder %s153, %s169
      %p171 = scmp.eq.s32.totalorder %s29, 0
      %p172 = por %p170, %p171
      %s173 = ssub.s32 %s31, %s38
      %p174 = scmp.eq.s32.totalorder %s173, 0
      %s176 = sadd.s32 %s175, 1
      %s177 = scalar_select %p174, %s175, %s176
      %p180 = pneg %p174
      %p181 = scmp.eq.s32.totalorder %s23, 7
      %p182 = por %p180, %p181
      %p183 = scmp.ne.s32.totalorder %s175, %s178
      %p184 = scmp.eq.s32.totalorder %s23, 0
      %p185 = por %p183, %p184
      %p186 = scmp.ne.s32.totalorder %s175, %s178
      %p187 = scmp.eq.s32.totalorder %s28, 7
      %p188 = por %p186, %p187
      %p189 = scmp.ne.s32.totalorder %s178, %s179
      %p190 = scmp.eq.s32.totalorder %s28, 0
      %p191 = por %p189, %p190
      %p192 = scmp.ne.s32.totalorder %s178, %s179
      %p193 = scmp.eq.s32.totalorder %s29, 7
      %p194 = por %p192, %p193
      %p196 = scmp.ne.s32.totalorder %s179, %s195
      %p197 = scmp.eq.s32.totalorder %s29, 0
      %p198 = por %p196, %p197
      %s199 = ssub.s32 %s31, %s38
      %p200 = scmp.eq.s32.totalorder %s199, 0
      %s202 = sadd.s32 %s201, 1
      %s203 = scalar_select %p200, %s201, %s202
      %p206 = pneg %p200
      %p207 = scmp.eq.s32.totalorder %s23, 7
      %p208 = por %p206, %p207
      %p209 = scmp.ne.s32.totalorder %s201, %s204
      %p210 = scmp.eq.s32.totalorder %s23, 0
      %p211 = por %p209, %p210
      %p212 = scmp.ne.s32.totalorder %s201, %s204
      %p213 = scmp.eq.s32.totalorder %s28, 7
      %p214 = por %p212, %p213
      %p215 = scmp.ne.s32.totalorder %s204, %s205
      %p216 = scmp.eq.s32.totalorder %s28, 0
      %p217 = por %p215, %p216
      %p218 = scmp.ne.s32.totalorder %s204, %s205
      %p219 = scmp.eq.s32.totalorder %s29, 7
      %p220 = por %p218, %p219
      %p222 = scmp.ne.s32.totalorder %s205, %s221
      %p223 = scmp.eq.s32.totalorder %s29, 0
      %p224 = por %p222, %p223
      %s225 = ssub.s32 %s30, %s42
      %p226 = scmp.eq.s32.totalorder %s225, 0
      %s228 = sadd.s32 %s227, 1
      %s229 = scalar_select %p226, %s227, %s228
      %p232 = pneg %p226
      %p233 = scmp.eq.s32.totalorder %s23, 7
      %p234 = por %p232, %p233
      %p235 = scmp.ne.s32.totalorder %s227, %s230
      %p236 = scmp.eq.s32.totalorder %s23, 0
      %p237 = por %p235, %p236
      %p238 = scmp.ne.s32.totalorder %s227, %s230
      %p239 = scmp.eq.s32.totalorder %s28, 7
      %p240 = por %p238, %p239
      %p241 = scmp.ne.s32.totalorder %s230, %s231
      %p242 = scmp.eq.s32.totalorder %s28, 0
      %p243 = por %p241, %p242
      %p244 = scmp.ne.s32.totalorder %s230, %s231
      %p245 = scmp.eq.s32.totalorder %s29, 7
      %p246 = por %p244, %p245
      %p248 = scmp.ne.s32.totalorder %s231, %s247
      %p249 = scmp.eq.s32.totalorder %s29, 0
      %p250 = por %p248, %p249
      %p251 = scmp.le.s32.totalorder 1, %s23
      %p252 = scmp.lt.s32.totalorder %s23, 9
      %p253 = pnand %p251, %p252
      %p254 = pneg %p253
      // Predicated region
      $region9: #{tpu_custom_call.1} parent=5 // pred_check
        _
      $region10: #{tpu_custom_call.1} parent=5 // pred_check_branch
        %256 = sbr.rel (%p253) target = $region12
      $region11: #{tpu_custom_call.1} parent=5 // pred_region
        %s257 = ssub.s32 %s23, 1
      $region12: #{tpu_custom_call.1} parent=5 // pred_fallthru
        _
      %p258 = scmp.lt.s32.totalorder %s23, 8
      // Predicated region
      $region13: #{tpu_custom_call.1} parent=5 // pred_check
        %p259 = pneg %p258
      $region14: #{tpu_custom_call.1} parent=5 // pred_check_branch
        %261 = sbr.rel (%p259) target = $region16
      $region15: #{tpu_custom_call.1} parent=5 // pred_region
        // Predicated region
        $region17: #{tpu_custom_call.1} parent=15 // pred_check
          %p262 = pneg %p55
        $region18: #{tpu_custom_call.1} parent=15 // pred_check_branch
          %264 = sbr.rel (%p262) target = $region20
        $region19: #{tpu_custom_call.1} parent=15 // pred_region
          %p265 = scmp.lt.s32.totalorder %s30, 1
          %s266 = scalar_select %p265, %s30, 1
          %s267 = smul.addr %s266, 4
          %s268 = smul.addr %s267, 8
          %s269 = scalar_lea.vmem %s1, %s268
        $region20: #{tpu_custom_call.1} parent=15 // pred_fallthru
          _
        // Predicated region
        $region21: #{tpu_custom_call.1} parent=15 // pred_check
          %p270 = pneg %p81
        $region22: #{tpu_custom_call.1} parent=15 // pred_check_branch
          %272 = sbr.rel (%p270) target = $region24
        $region23: #{tpu_custom_call.1} parent=15 // pred_region
          %p273 = scmp.lt.s32.totalorder %s30, 1
          %s274 = scalar_select %p273, %s30, 1
          %s275 = scalar_lea.vmem %s2, %s274
        $region24: #{tpu_custom_call.1} parent=15 // pred_fallthru
          _
        // Predicated region
        $region25: #{tpu_custom_call.1} parent=15 // pred_check
          %p276 = pneg %p107
        $region26: #{tpu_custom_call.1} parent=15 // pred_check_branch
          %278 = sbr.rel (%p276) target = $region28
        $region27: #{tpu_custom_call.1} parent=15 // pred_region
          %p279 = scmp.lt.s32.totalorder %s30, 1
          %s280 = scalar_select %p279, %s30, 1
          %s281 = smul.addr %s280, 2
          %s282 = smul.addr %s281, 8
          %s283 = scalar_lea.vmem %s3, %s282
        $region28: #{tpu_custom_call.1} parent=15 // pred_fallthru
          _
        // Predicated region
        $region29: #{tpu_custom_call.1} parent=15 // pred_check
          %p284 = pneg %p133
        $region30: #{tpu_custom_call.1} parent=15 // pred_check_branch
          %286 = sbr.rel (%p284) target = $region32
        $region31: #{tpu_custom_call.1} parent=15 // pred_region
          %p287 = scmp.lt.s32.totalorder %s31, 3
          %s288 = scalar_select %p287, %s31, 3
          %s289 = smul.addr %s288, 8
          %s290 = smul.addr %s289, 8
          %s291 = scalar_lea.vmem %s4, %s290
        $region32: #{tpu_custom_call.1} parent=15 // pred_fallthru
          _
        // Predicated region
        $region33: #{tpu_custom_call.1} parent=15 // pred_check
          %p292 = pneg %p159
        $region34: #{tpu_custom_call.1} parent=15 // pred_check_branch
          %294 = sbr.rel (%p292) target = $region36
        $region35: #{tpu_custom_call.1} parent=15 // pred_region
          %p295 = scmp.lt.s32.totalorder %s31, 3
          %s296 = scalar_select %p295, %s31, 3
          %s297 = smul.addr %s296, 8
          %s298 = smul.addr %s297, 8
          %s299 = scalar_lea.vmem %s5, %s298
        $region36: #{tpu_custom_call.1} parent=15 // pred_fallthru
          _
        // Predicated region
        $region37: #{tpu_custom_call.1} parent=15 // pred_check
          %p300 = pneg %p185
        $region38: #{tpu_custom_call.1} parent=15 // pred_check_branch
          %302 = sbr.rel (%p300) target = $region40
        $region39: #{tpu_custom_call.1} parent=15 // pred_region
          %p303 = scmp.lt.s32.totalorder %s31, 3
          %s304 = scalar_select %p303, %s31, 3
          %s305 = smul.addr %s304, 8
          %s306 = smul.addr %s305, 8
          %s307 = scalar_lea.vmem %s6, %s306
        $region40: #{tpu_custom_call.1} parent=15 // pred_fallthru
          _
        // Predicated region
        $region41: #{tpu_custom_call.1} parent=15 // pred_check
          %p308 = pneg %p211
        $region42: #{tpu_custom_call.1} parent=15 // pred_check_branch
          %310 = sbr.rel (%p308) target = $region44
        $region43: #{tpu_custom_call.1} parent=15 // pred_region
          %p311 = scmp.lt.s32.totalorder %s31, 3
          %s312 = scalar_select %p311, %s31, 3
          %s313 = smul.addr %s312, 8
          %s314 = smul.addr %s313, 8
          %s315 = scalar_lea.vmem %s7, %s314
        $region44: #{tpu_custom_call.1} parent=15 // pred_fallthru
          _
      $region16: #{tpu_custom_call.1} parent=5 // pred_fallthru
        _
      %p316 = scmp.le.s32.totalorder 1, %s23
      %p317 = scmp.lt.s32.totalorder %s23, 9
      %p318 = pnand %p316, %p317
      %p319 = pneg %p318
      // Predicated region
      $region45: #{tpu_custom_call.1} parent=5 // pred_check
        _
      $region46: #{tpu_custom_call.1} parent=5 // pred_check_branch
        %321 = sbr.rel (%p318) target = $region48
      $region47: #{tpu_custom_call.1} parent=5 // pred_region
        %s322 = ssub.s32 %s23, 1
        %p323 = scmp.lt.s32.totalorder %s32, 1
        %s324 = scalar_select %p323, %s32, 1
        %s325 = smul.addr %s324, 4
        %s326 = smul.addr %s325, 8
        %s327 = scalar_lea.vmem %s1, %s326
        %p328 = pneg %p61
        %p329 = pneg %p58
        %p330 = scmp.lt.s32.totalorder %s32, 1
        %s331 = scalar_select %p330, %s32, 1
        %s332 = scalar_lea.vmem %s2, %s331
        %p333 = pneg %p87
        %p334 = pneg %p84
        %p335 = scmp.lt.s32.totalorder %s32, 1
        %s336 = scalar_select %p335, %s32, 1
        %s337 = smul.addr %s336, 2
        %s338 = smul.addr %s337, 8
        %s339 = scalar_lea.vmem %s3, %s338
        %p340 = pneg %p113
        %p341 = pneg %p110
        %p342 = scmp.lt.s32.totalorder %s33, 3
        %s343 = scalar_select %p342, %s33, 3
        %s344 = smul.addr %s343, 8
        %s345 = smul.addr %s344, 8
        %s346 = scalar_lea.vmem %s4, %s345
        %p347 = pneg %p139
        %p348 = pneg %p136
        %p349 = scmp.lt.s32.totalorder %s33, 3
        %s350 = scalar_select %p349, %s33, 3
        %s351 = smul.addr %s350, 8
        %s352 = smul.addr %s351, 8
        %s353 = scalar_lea.vmem %s5, %s352
        %p354 = pneg %p165
        %p355 = pneg %p162
        %p356 = scmp.lt.s32.totalorder %s33, 3
        %s357 = scalar_select %p356, %s33, 3
        %s358 = smul.addr %s357, 8
        %s359 = smul.addr %s358, 8
        %s360 = scalar_lea.vmem %s6, %s359
        %p361 = pneg %p191
        %p362 = pneg %p188
        %p363 = scmp.lt.s32.totalorder %s33, 3
        %s364 = scalar_select %p363, %s33, 3
        %s365 = smul.addr %s364, 8
        %s366 = smul.addr %s365, 8
        %s367 = scalar_lea.vmem %s7, %s366
        %p368 = pneg %p217
        %p369 = pneg %p214
        %p370 = pneg %p243
        %p371 = pneg %p240
        %s372 = sand.u32 %s230, 1
        %s373 = scalar_lea.sflag [#allocation6], %s372
        %s374 = sand.u32 %s230, 1
        %s375 = smul.addr %s374, 32
        %s376 = scalar_lea.vmem [#allocation5], %s375
        %p377 = scmp.lt.s32.totalorder %s32, 1
        %s378 = scalar_select %p377, %s32, 1
        %s379 = smul.addr %s378, 4
        %s380 = smul.addr %s379, 8
        %s381 = scalar_lea.vmem %s1, %s380
        %p382 = scmp.lt.s32.totalorder %s32, 1
        %s383 = scalar_select %p382, %s32, 1
        %s384 = scalar_lea.vmem %s2, %s383
        %p385 = scmp.lt.s32.totalorder %s32, 1
        %s386 = scalar_select %p385, %s32, 1
        %s387 = smul.addr %s386, 2
        %s388 = smul.addr %s387, 8
        %s389 = scalar_lea.vmem %s3, %s388
        %p390 = scmp.lt.s32.totalorder %s33, 3
        %s391 = scalar_select %p390, %s33, 3
        %s392 = smul.addr %s391, 8
        %s393 = smul.addr %s392, 8
        %s394 = scalar_lea.vmem %s4, %s393
        %p395 = scmp.lt.s32.totalorder %s33, 3
        %s396 = scalar_select %p395, %s33, 3
        %s397 = smul.addr %s396, 8
        %s398 = smul.addr %s397, 8
        %s399 = scalar_lea.vmem %s5, %s398
        %p400 = scmp.lt.s32.totalorder %s33, 3
        %s401 = scalar_select %p400, %s33, 3
        %s402 = smul.addr %s401, 8
        %s403 = smul.addr %s402, 8
        %s404 = scalar_lea.vmem %s6, %s403
        %p405 = scmp.lt.s32.totalorder %s33, 3
        %s406 = scalar_select %p405, %s33, 3
        %s407 = smul.addr %s406, 8
        %s408 = smul.addr %s407, 8
        %s409 = scalar_lea.vmem %s7, %s408
        %p410 = scmp.eq.s32.totalorder %s33, 0
        // Predicated region
        $region49: #{tpu_custom_call.1} parent=47 // pred_check
          %p411 = pneg %p410
        $region50: #{tpu_custom_call.1} parent=47 // pred_check_branch
          %413 = sbr.rel (%p411) target = $region52
        $region51: #{tpu_custom_call.1} parent=47 // pred_region
          %v414 = vld [vmem:[%s381] sm:$0xff]
          %v415 = vld [vmem:[%s381 + $0x8] sm:$0xff]
          %v416 = vld [vmem:[%s381 + $0x10] sm:$0xff]
          %v417 = vld [vmem:[%s381 + $0x18] sm:$0xff]
          %418 = vst [vmem:[#allocation2] sm:$0xff] %v414
          %419 = vst [vmem:[#allocation2 + $0x8] sm:$0xff] %v415
          %420 = vst [vmem:[#allocation2 + $0x10] sm:$0xff] %v416
          %421 = vst [vmem:[#allocation2 + $0x18] sm:$0xff] %v417
          %422 = vst [vmem:[%s376] sm:$0xff] 0.0
          %423 = vst [vmem:[%s376 + $0x8] sm:$0xff] 0.0
          %424 = vst [vmem:[%s376 + $0x10] sm:$0xff] 0.0
          %425 = vst [vmem:[%s376 + $0x18] sm:$0xff] 0.0
        $region52: #{tpu_custom_call.1} parent=47 // pred_fallthru
          _
        %v426 = vld [vmem:[%s384] sm:$0x1]
        %v427 = vld [vmem:[%s389] sm:$0xff]
        %v428 = vld [vmem:[%s389 + $0x8] sm:$0xff]
        %v429 = vld [vmem:[#allocation2] sm:$0xff]
        %v430 = vld [vmem:[#allocation2 + $0x8] sm:$0xff]
        %v431 = vld [vmem:[#allocation2 + $0x10] sm:$0xff]
        %v432 = vld [vmem:[#allocation2 + $0x18] sm:$0xff]
        %v433 = vlaneseq
        %v434 = vand.u32 %v433, 127
        %435 = vrot.lane.b32.xlu0 %v429, 1
        %v436 = vpop.permute.xlu0 %435
        %437 = vrot.lane.b32.xlu0 %v430, 1
        %v438 = vpop.permute.xlu0 %437
        %439 = vrot.lane.b32.xlu0 %v431, 1
        %v440 = vpop.permute.xlu0 %439
        %441 = vrot.lane.b32.xlu0 %v432, 1
        %v442 = vpop.permute.xlu0 %441
        %v443 = vadd.s32 %v434, 4294967295
        %vm444 = vcmp.ge.s32.totalorder %v443, 0
        %vm445 = vcmp.lt.s32.totalorder %v443, 128
        %vm446 = vmand %vm444, %vm445
        %v447 = vsel %vm446, 1, 0
        %vm448 = vcmp.eq.s32.totalorder %v447, 1
        %v449 = vsel %vm448, %v436, 0.0
        %v450 = vsel %vm448, %v438, 0.0
        %v451 = vsel %vm448, %v440, 0.0
        %v452 = vsel %vm448, %v442, 0.0
        %453 = vrot.lane.b32.xlu0 %v429, 127
        %v454 = vpop.permute.xlu0 %453
        %455 = vrot.lane.b32.xlu0 %v430, 127
        %v456 = vpop.permute.xlu0 %455
        %457 = vrot.lane.b32.xlu0 %v431, 127
        %v458 = vpop.permute.xlu0 %457
        %459 = vrot.lane.b32.xlu0 %v432, 127
        %v460 = vpop.permute.xlu0 %459
        %v461 = vadd.s32 %v434, 1
        %vm462 = vcmp.ge.s32.totalorder %v461, 0
        %vm463 = vcmp.lt.s32.totalorder %v461, 128
        %vm464 = vmand %vm462, %vm463
        %v465 = vsel %vm464, 1, 0
        %vm466 = vcmp.eq.s32.totalorder %v465, 1
        %v467 = vsel %vm466, %v454, 0.0
        %v468 = vsel %vm466, %v456, 0.0
        %v469 = vsel %vm466, %v458, 0.0
        %v470 = vsel %vm466, %v460, 0.0
        %v471 = vld [vmem:[%s394] sm:$0xff]
        %v472 = vld [vmem:[%s394 + $0x8] sm:$0xff]
        %v473 = vld [vmem:[%s394 + $0x10] sm:$0xff]
        %v474 = vld [vmem:[%s394 + $0x18] sm:$0xff]
        %v475 = vld [vmem:[%s394 + $0x20] sm:$0xff]
        %v476 = vld [vmem:[%s394 + $0x28] sm:$0xff]
        %v477 = vld [vmem:[%s394 + $0x30] sm:$0xff]
        %v478 = vld [vmem:[%s394 + $0x38] sm:$0xff]
        %v479 = vld [vmem:[%s399] sm:$0xff]
        %v480 = vld [vmem:[%s399 + $0x8] sm:$0xff]
        %v481 = vld [vmem:[%s399 + $0x10] sm:$0xff]
        %v482 = vld [vmem:[%s399 + $0x18] sm:$0xff]
        %v483 = vld [vmem:[%s399 + $0x20] sm:$0xff]
        %v484 = vld [vmem:[%s399 + $0x28] sm:$0xff]
        %v485 = vld [vmem:[%s399 + $0x30] sm:$0xff]
        %v486 = vld [vmem:[%s399 + $0x38] sm:$0xff]
        %488 = vset.pattern.permute.xlu0 0
        %489 = vperm.xlu0 %488, %v479
        %v490 = vpop.permute.xlu0 %489
        %493 = vset.pattern.permute.xlu0 0
        %494 = vperm.xlu0 %493, %v480
        %v495 = vpop.permute.xlu0 %494
        %498 = vset.pattern.permute.xlu0 0
        %499 = vperm.xlu0 %498, %v481
        %v500 = vpop.permute.xlu0 %499
        %503 = vset.pattern.permute.xlu0 0
        %504 = vperm.xlu0 %503, %v482
        %v505 = vpop.permute.xlu0 %504
        %508 = vset.pattern.permute.xlu0 0
        %509 = vperm.xlu0 %508, %v483
        %v510 = vpop.permute.xlu0 %509
        %513 = vset.pattern.permute.xlu0 0
        %514 = vperm.xlu0 %513, %v484
        %v515 = vpop.permute.xlu0 %514
        %518 = vset.pattern.permute.xlu0 0
        %519 = vperm.xlu0 %518, %v485
        %v520 = vpop.permute.xlu0 %519
        %523 = vset.pattern.permute.xlu0 0
        %524 = vperm.xlu0 %523, %v486
        %v525 = vpop.permute.xlu0 %524
        %vm527 = vcmask 916480
        %v529 = vsel %vm527, %v471, 0
        %v532 = vsel %vm527, %v472, 0
        %v535 = vsel %vm527, %v473, 0
        %v538 = vsel %vm527, %v474, 0
        %v541 = vsel %vm527, %v475, 0
        %v544 = vsel %vm527, %v476, 0
        %v547 = vsel %vm527, %v477, 0
        %v550 = vsel %vm527, %v478, 0
        %552 = vmatprep.subr.mxu0 0.0
        %553 = vmatpush1.msra.mxu0 0.0
        %554 = vmatprep.subr.mxu0 0.0
        %555 = vmatpush1.msra.mxu0 0.0
        %556 = vmatprep.subr.mxu0 0.0
        %557 = vmatpush1.msra.mxu0 %v470
        %558 = vmatprep.subr.mxu0 0.0
        %559 = vmatpush1.msra.mxu0 %v469
        %560 = vmatprep.subr.mxu0 0.0
        %561 = vmatpush1.msra.mxu0 %v468
        %562 = vmatprep.subr.mxu0 0.0
        %563 = vmatpush1.msra.mxu0 %v467
        %564 = vmatprep.subr.mxu0 0.0
        %565 = vmatpush1.msra.mxu0 %v432
        %566 = vmatprep.subr.mxu0 0.0
        %567 = vmatpush1.msra.mxu0 %v431
        %568 = vmatprep.subr.mxu0 0.0
        %569 = vmatpush1.msra.mxu0 %v430
        %570 = vmatprep.subr.mxu0 0.0
        %571 = vmatpush1.msra.mxu0 %v429
        %572 = vmatprep.subr.mxu0 0.0
        %573 = vmatpush1.msra.mxu0 %v452
        %574 = vmatprep.subr.mxu0 0.0
        %575 = vmatpush1.msra.mxu0 %v451
        %576 = vmatprep.subr.mxu0 0.0
        %577 = vmatpush1.msra.mxu0 %v450
        %578 = vmatprep.subr.mxu0 0.0
        %579 = vmatpush1.msra.mxu0 %v449
        %580 = vmatprep.subr.mxu0 0.0
        %581 = vmatpush1.msra.mxu0 %v428
        %582 = vmatprep.subr.mxu0 0.0
        %583 = vmatpush1.msra.mxu0 %v427
        %584 = vmatprep.subr.mxu0 0.0
        %585 = vmatpush2.msra.mxu0 0.0
        %586 = vmatprep.subr.mxu0 0.0
        %587 = vmatpush2.msra.mxu0 0.0
        %588 = vmatprep.subr.mxu0 0.0
        %589 = vmatpush2.msra.mxu0 0.0
        %590 = vmatprep.subr.mxu0 0.0
        %591 = vmatpush2.msra.mxu0 0.0
        %592 = vmatprep.subr.mxu0 0.0
        %593 = vmatpush2.msra.mxu0 0.0
        %594 = vmatprep.subr.mxu0 0.0
        %595 = vmatpush2.msra.mxu0 0.0
        %596 = vmatprep.subr.mxu0 0.0
        %597 = vmatpush2.msra.mxu0 0.0
        %598 = vmatprep.subr.mxu0 0.0
        %599 = vmatpush2.msra.mxu0 0.0
        %600 = vmatprep.subr.mxu0 0.0
        %601 = vmatpush2.msra.mxu0 0.0
        %602 = vmatprep.subr.mxu0 0.0
        %603 = vmatpush2.msra.mxu0 0.0
        %604 = vmatprep.subr.mxu0 0.0
        %605 = vmatpush2.msra.mxu0 0.0
        %606 = vmatprep.subr.mxu0 0.0
        %607 = vmatpush2.msra.mxu0 0.0
        %608 = vmatprep.subr.mxu0 0.0
        %609 = vmatpush2.msra.mxu0 0.0
        %610 = vmatprep.subr.mxu0 0.0
        %611 = vmatpush2.msra.mxu0 0.0
        %612 = vmatprep.subr.mxu0 0.0
        %613 = vmatpush2.msra.mxu0 0.0
        %614 = vmatprep.subr.mxu0 0.0
        %615 = vmatpush2.msra.mxu0 0.0
        %616 = vmatprep.mubr.f32.mxu0 0.0
        %617 = vmatmul.mubr.f32.gmra.mxu0 %v529
        %v618 = vpop.f32.mrf.mxu0
        %v619 = vadd.f32 %v490, %v618
        %v620 = vpop.f32.mrf.mxu0
        %621 = vmatprep.mubr.f32.mxu0 0.0
        %622 = vmatmul.mubr.f32.gmra.mxu0 %v532
        %v623 = vpop.f32.mrf.mxu0
        %v624 = vadd.f32 %v495, %v623
        %v625 = vpop.f32.mrf.mxu0
        %626 = vmatprep.mubr.f32.mxu0 0.0
        %627 = vmatmul.mubr.f32.gmra.mxu0 %v535
        %v628 = vpop.f32.mrf.mxu0
        %v629 = vadd.f32 %v500, %v628
        %v630 = vpop.f32.mrf.mxu0
        %631 = vmatprep.mubr.f32.mxu0 0.0
        %632 = vmatmul.mubr.f32.gmra.mxu0 %v538
        %v633 = vpop.f32.mrf.mxu0
        %v634 = vadd.f32 %v505, %v633
        %v635 = vpop.f32.mrf.mxu0
        %636 = vmatprep.mubr.f32.mxu0 0.0
        %637 = vmatmul.mubr.f32.gmra.mxu0 %v541
        %v638 = vpop.f32.mrf.mxu0
        %v639 = vadd.f32 %v510, %v638
        %v640 = vpop.f32.mrf.mxu0
        %641 = vmatprep.mubr.f32.mxu0 0.0
        %642 = vmatmul.mubr.f32.gmra.mxu0 %v544
        %v643 = vpop.f32.mrf.mxu0
        %v644 = vadd.f32 %v515, %v643
        %v645 = vpop.f32.mrf.mxu0
        %646 = vmatprep.mubr.f32.mxu0 0.0
        %647 = vmatmul.mubr.f32.gmra.mxu0 %v547
        %v648 = vpop.f32.mrf.mxu0
        %v649 = vadd.f32 %v520, %v648
        %v650 = vpop.f32.mrf.mxu0
        %651 = vmatprep.mubr.f32.mxu0 0.0
        %652 = vmatmul.mubr.f32.gmra.mxu0 %v550
        %v653 = vpop.f32.mrf.mxu0
        %v654 = vadd.f32 %v525, %v653
        %v655 = vpop.f32.mrf.mxu0
        %656 = vdwg.mxu0
        %v657 = vtanh.pop %v619
        %v658 = vtanh.pop %v624
        %v659 = vtanh.pop %v629
        %v660 = vtanh.pop %v634
        %v661 = vmul.f32 %v639, 0.5
        %v662 = vmul.f32 %v644, 0.5
        %v663 = vmul.f32 %v649, 0.5
        %v664 = vmul.f32 %v654, 0.5
        %v665 = vtanh.pop %v661
        %v666 = vtanh.pop %v662
        %v667 = vtanh.pop %v663
        %v668 = vtanh.pop %v664
        %v669 = vadd.f32 %v665, 1.0
        %v670 = vadd.f32 %v666, 1.0
        %v671 = vadd.f32 %v667, 1.0
        %v672 = vadd.f32 %v668, 1.0
        %v673 = vmul.f32 %v669, 0.5
        %v674 = vmul.f32 %v670, 0.5
        %v675 = vmul.f32 %v671, 0.5
        %v676 = vmul.f32 %v672, 0.5
        %v677 = vmul.f32 %v657, %v673
        %v678 = vmul.f32 %v658, %v674
        %v679 = vmul.f32 %v659, %v675
        %v680 = vmul.f32 %v660, %v676
        %v681 = vld [vmem:[%s404] sm:$0xff]
        %v682 = vld [vmem:[%s404 + $0x8] sm:$0xff]
        %v683 = vld [vmem:[%s404 + $0x10] sm:$0xff]
        %v684 = vld [vmem:[%s404 + $0x18] sm:$0xff]
        %v685 = vld [vmem:[%s404 + $0x20] sm:$0xff]
        %v686 = vld [vmem:[%s404 + $0x28] sm:$0xff]
        %v687 = vld [vmem:[%s404 + $0x30] sm:$0xff]
        %v688 = vld [vmem:[%s404 + $0x38] sm:$0xff]
        %v689 = vld [vmem:[%s409] sm:$0xff]
        %v690 = vld [vmem:[%s409 + $0x8] sm:$0xff]
        %v691 = vld [vmem:[%s409 + $0x10] sm:$0xff]
        %v692 = vld [vmem:[%s409 + $0x18] sm:$0xff]
        %v693 = vld [vmem:[%s409 + $0x20] sm:$0xff]
        %v694 = vld [vmem:[%s409 + $0x28] sm:$0xff]
        %v695 = vld [vmem:[%s409 + $0x30] sm:$0xff]
        %v696 = vld [vmem:[%s409 + $0x38] sm:$0xff]
        %698 = vset.pattern.permute.xlu0 0
        %699 = vperm.xlu0 %698, %v689
        %v700 = vpop.permute.xlu0 %699
        %703 = vset.pattern.permute.xlu0 0
        %704 = vperm.xlu0 %703, %v690
        %v705 = vpop.permute.xlu0 %704
        %708 = vset.pattern.permute.xlu0 0
        %709 = vperm.xlu0 %708, %v691
        %v710 = vpop.permute.xlu0 %709
        %713 = vset.pattern.permute.xlu0 0
        %714 = vperm.xlu0 %713, %v692
        %v715 = vpop.permute.xlu0 %714
        %718 = vset.pattern.permute.xlu0 0
        %719 = vperm.xlu0 %718, %v693
        %v720 = vpop.permute.xlu0 %719
        %723 = vset.pattern.permute.xlu0 0
        %724 = vperm.xlu0 %723, %v694
        %v725 = vpop.permute.xlu0 %724
        %728 = vset.pattern.permute.xlu0 0
        %729 = vperm.xlu0 %728, %v695
        %v730 = vpop.permute.xlu0 %729
        %733 = vset.pattern.permute.xlu0 0
        %734 = vperm.xlu0 %733, %v696
        %v735 = vpop.permute.xlu0 %734
        %vm737 = vcmask 261120
        %v739 = vsel %vm737, %v681, 0
        %v742 = vsel %vm737, %v682, 0
        %v745 = vsel %vm737, %v683, 0
        %v748 = vsel %vm737, %v684, 0
        %v751 = vsel %vm737, %v685, 0
        %v754 = vsel %vm737, %v686, 0
        %v757 = vsel %vm737, %v687, 0
        %v760 = vsel %vm737, %v688, 0
        %762 = vmatprep.subr.mxu0 0.0
        %763 = vmatpush1.msra.mxu0 0.0
        %764 = vmatprep.subr.mxu0 0.0
        %765 = vmatpush1.msra.mxu0 0.0
        %766 = vmatprep.subr.mxu0 0.0
        %767 = vmatpush1.msra.mxu0 0.0
        %768 = vmatprep.subr.mxu0 0.0
        %769 = vmatpush1.msra.mxu0 0.0
        %770 = vmatprep.subr.mxu0 0.0
        %771 = vmatpush1.msra.mxu0 0.0
        %772 = vmatprep.subr.mxu0 0.0
        %773 = vmatpush1.msra.mxu0 0.0
        %774 = vmatprep.subr.mxu0 0.0
        %775 = vmatpush1.msra.mxu0 0.0
        %776 = vmatprep.subr.mxu0 0.0
        %777 = vmatpush1.msra.mxu0 0.0
        %778 = vmatprep.subr.mxu0 0.0
        %779 = vmatpush1.msra.mxu0 0.0
        %780 = vmatprep.subr.mxu0 0.0
        %781 = vmatpush1.msra.mxu0 0.0
        %782 = vmatprep.subr.mxu0 0.0
        %783 = vmatpush1.msra.mxu0 0.0
        %784 = vmatprep.subr.mxu0 0.0
        %785 = vmatpush1.msra.mxu0 0.0
        %786 = vmatprep.subr.mxu0 0.0
        %787 = vmatpush1.msra.mxu0 %v680
        %788 = vmatprep.subr.mxu0 0.0
        %789 = vmatpush1.msra.mxu0 %v679
        %790 = vmatprep.subr.mxu0 0.0
        %791 = vmatpush1.msra.mxu0 %v678
        %792 = vmatprep.subr.mxu0 0.0
        %793 = vmatpush1.msra.mxu0 %v677
        %794 = vmatprep.subr.mxu0 0.0
        %795 = vmatpush2.msra.mxu0 0.0
        %796 = vmatprep.subr.mxu0 0.0
        %797 = vmatpush2.msra.mxu0 0.0
        %798 = vmatprep.subr.mxu0 0.0
        %799 = vmatpush2.msra.mxu0 0.0
        %800 = vmatprep.subr.mxu0 0.0
        %801 = vmatpush2.msra.mxu0 0.0
        %802 = vmatprep.subr.mxu0 0.0
        %803 = vmatpush2.msra.mxu0 0.0
        %804 = vmatprep.subr.mxu0 0.0
        %805 = vmatpush2.msra.mxu0 0.0
        %806 = vmatprep.subr.mxu0 0.0
        %807 = vmatpush2.msra.mxu0 0.0
        %808 = vmatprep.subr.mxu0 0.0
        %809 = vmatpush2.msra.mxu0 0.0
        %810 = vmatprep.subr.mxu0 0.0
        %811 = vmatpush2.msra.mxu0 0.0
        %812 = vmatprep.subr.mxu0 0.0
        %813 = vmatpush2.msra.mxu0 0.0
        %814 = vmatprep.subr.mxu0 0.0
        %815 = vmatpush2.msra.mxu0 0.0
        %816 = vmatprep.subr.mxu0 0.0
        %817 = vmatpush2.msra.mxu0 0.0
        %818 = vmatprep.subr.mxu0 0.0
        %819 = vmatpush2.msra.mxu0 0.0
        %820 = vmatprep.subr.mxu0 0.0
        %821 = vmatpush2.msra.mxu0 0.0
        %822 = vmatprep.subr.mxu0 0.0
        %823 = vmatpush2.msra.mxu0 0.0
        %824 = vmatprep.subr.mxu0 0.0
        %825 = vmatpush2.msra.mxu0 0.0
        %826 = vmatprep.mubr.f32.mxu0 0.0
        %827 = vmatmul.mubr.f32.gmra.mxu0 %v739
        %v828 = vpop.f32.mrf.mxu0
        %v829 = vadd.f32 %v700, %v828
        %v830 = vpop.f32.mrf.mxu0
        %831 = vmatprep.mubr.f32.mxu0 0.0
        %832 = vmatmul.mubr.f32.gmra.mxu0 %v742
        %v833 = vpop.f32.mrf.mxu0
        %v834 = vadd.f32 %v705, %v833
        %v835 = vpop.f32.mrf.mxu0
        %836 = vmatprep.mubr.f32.mxu0 0.0
        %837 = vmatmul.mubr.f32.gmra.mxu0 %v745
        %v838 = vpop.f32.mrf.mxu0
        %v839 = vadd.f32 %v710, %v838
        %v840 = vpop.f32.mrf.mxu0
        %841 = vmatprep.mubr.f32.mxu0 0.0
        %842 = vmatmul.mubr.f32.gmra.mxu0 %v748
        %v843 = vpop.f32.mrf.mxu0
        %v844 = vadd.f32 %v715, %v843
        %v845 = vpop.f32.mrf.mxu0
        %846 = vmatprep.mubr.f32.mxu0 0.0
        %847 = vmatmul.mubr.f32.gmra.mxu0 %v751
        %v848 = vpop.f32.mrf.mxu0
        %v849 = vadd.f32 %v720, %v848
        %v850 = vpop.f32.mrf.mxu0
        %851 = vmatprep.mubr.f32.mxu0 0.0
        %852 = vmatmul.mubr.f32.gmra.mxu0 %v754
        %v853 = vpop.f32.mrf.mxu0
        %v854 = vadd.f32 %v725, %v853
        %v855 = vpop.f32.mrf.mxu0
        %856 = vmatprep.mubr.f32.mxu0 0.0
        %857 = vmatmul.mubr.f32.gmra.mxu0 %v757
        %v858 = vpop.f32.mrf.mxu0
        %v859 = vadd.f32 %v730, %v858
        %v860 = vpop.f32.mrf.mxu0
        %861 = vmatprep.mubr.f32.mxu0 0.0
        %862 = vmatmul.mubr.f32.gmra.mxu0 %v760
        %v863 = vpop.f32.mrf.mxu0
        %v864 = vadd.f32 %v735, %v863
        %v865 = vpop.f32.mrf.mxu0
        %866 = vdwg.mxu0
        %v867 = vld [vmem:[%s376] sm:$0xff]
        %v868 = vld [vmem:[%s376 + $0x8] sm:$0xff]
        %v869 = vld [vmem:[%s376 + $0x10] sm:$0xff]
        %v870 = vld [vmem:[%s376 + $0x18] sm:$0xff]
        %v871 = vadd.f32 %v867, %v849
        %v872 = vadd.f32 %v868, %v854
        %v873 = vadd.f32 %v869, %v859
        %v874 = vadd.f32 %v870, %v864
        %875 = vst [vmem:[%s376] sm:$0xff] %v871
        %876 = vst [vmem:[%s376 + $0x8] sm:$0xff] %v872
        %877 = vst [vmem:[%s376 + $0x10] sm:$0xff] %v873
        %878 = vst [vmem:[%s376 + $0x18] sm:$0xff] %v874
        %p879 = scmp.lt.s32.totalorder %s33, 3
        // Predicated region
        $region53: #{tpu_custom_call.1} parent=47 // pred_check
          %p880 = pneg %p879
        $region54: #{tpu_custom_call.1} parent=47 // pred_check_branch
          %882 = sbr.rel (%p880) target = $region56
        $region55: #{tpu_custom_call.1} parent=47 // pred_region
          %v883 = vadd.f32 %v429, %v829
          %v884 = vadd.f32 %v430, %v834
          %v885 = vadd.f32 %v431, %v839
          %v886 = vadd.f32 %v432, %v844
          %v888 = vlaneseq
          %v889 = vshrl.u32 %v888, 7
          %v890 = vsub.s32 0, %v889
          %v891 = vrot.slane %v426, %v890
          %v893 = vmul.f32 %v883, %v891
          %v894 = vmul.f32 %v884, %v891
          %v895 = vmul.f32 %v885, %v891
          %v896 = vmul.f32 %v886, %v891
          %897 = vst [vmem:[#allocation2] sm:$0xff] %v893
          %898 = vst [vmem:[#allocation2 + $0x8] sm:$0xff] %v894
          %899 = vst [vmem:[#allocation2 + $0x10] sm:$0xff] %v895
          %900 = vst [vmem:[#allocation2 + $0x18] sm:$0xff] %v896
        $region56: #{tpu_custom_call.1} parent=47 // pred_fallthru
          _
        %p901 = scmp.eq.s32.totalorder %s33, 3
        // Predicated region
        $region57: #{tpu_custom_call.1} parent=47 // pred_check
          %p902 = pneg %p901
        $region58: #{tpu_custom_call.1} parent=47 // pred_check_branch
          %904 = sbr.rel (%p902) target = $region60
        $region59: #{tpu_custom_call.1} parent=47 // pred_region
          %v905 = vld [vmem:[%s376] sm:$0xff]
          %v906 = vld [vmem:[%s376 + $0x8] sm:$0xff]
          %v907 = vld [vmem:[%s376 + $0x10] sm:$0xff]
          %v908 = vld [vmem:[%s376 + $0x18] sm:$0xff]
          %v910 = vlaneseq
          %v911 = vshrl.u32 %v910, 7
          %v912 = vsub.s32 0, %v911
          %v913 = vrot.slane %v426, %v912
          %v915 = vmul.f32 %v905, %v913
          %v916 = vmul.f32 %v906, %v913
          %v917 = vmul.f32 %v907, %v913
          %v918 = vmul.f32 %v908, %v913
          %919 = vst [vmem:[%s376] sm:$0xff] %v915
          %920 = vst [vmem:[%s376 + $0x8] sm:$0xff] %v916
          %921 = vst [vmem:[%s376 + $0x10] sm:$0xff] %v917
          %922 = vst [vmem:[%s376 + $0x18] sm:$0xff] %v918
        $region60: #{tpu_custom_call.1} parent=47 // pred_fallthru
          _
        %s923 = sand.u32 %s230, 1
        %s924 = scalar_lea.sflag [#allocation6], %s923
        %s925 = sand.u32 %s230, 1
        %s926 = smul.addr %s925, 32
        %s927 = scalar_lea.vmem [#allocation5], %s926
        // Predicated region
        $region61: #{tpu_custom_call.1} parent=47 // pred_check
          %p928 = pneg %p240
        $region62: #{tpu_custom_call.1} parent=47 // pred_check_branch
          %930 = sbr.rel (%p928) target = $region64
        $region63: #{tpu_custom_call.1} parent=47 // pred_region
          %s932 = ssub.s32 512, 512
          %933 = vsyncadd %s924, %s932
          %s934 = smul.addr %s32, 4
          %s935 = smul.addr %s934, 128
          %s936 = scalar_lea.hbm %s8, %s935
          %s937 = sshll.u32 %s927, 4
          %s938 = int_to_ptr.vmem [resolvable:$true] %s937
          %943 = dma.vmem_to_hbm [thread:$0]  %s938, 512, %s936, %s924, 128, 128, 8
        $region64: #{tpu_custom_call.1} parent=47 // pred_fallthru
          _
      $region48: #{tpu_custom_call.1} parent=5 // pred_fallthru
        _
      %p944 = scmp.le.s32.totalorder 2, %s23
      // Predicated region
      $region65: #{tpu_custom_call.1} parent=5 // pred_check
        %p945 = pneg %p944
      $region66: #{tpu_custom_call.1} parent=5 // pred_check_branch
        %947 = sbr.rel (%p945) target = $region68
      $region67: #{tpu_custom_call.1} parent=5 // pred_region
        %s948 = ssub.s32 %s23, 2
        // Predicated region
        $region69: #{tpu_custom_call.1} parent=67 // pred_check
          %p949 = pneg %p246
        $region70: #{tpu_custom_call.1} parent=67 // pred_check_branch
          %951 = sbr.rel (%p949) target = $region72
        $region71: #{tpu_custom_call.1} parent=67 // pred_region
          %s952 = sand.u32 %s231, 1
          %s953 = scalar_lea.sflag [#allocation6], %s952
          %s954 = sand.u32 %s231, 1
          %s955 = smul.addr %s954, 32
          %s956 = scalar_lea.vmem [#allocation5], %s955
          %957 = dma.done %s953, 512
        $region72: #{tpu_custom_call.1} parent=67 // pred_fallthru
          _
      $region68: #{tpu_custom_call.1} parent=5 // pred_fallthru
        _
    $region6: #{tpu_custom_call.1} parent=1 // loop_footer
      %s27 = sadd.s32 1, %s23
    $region7: #{tpu_custom_call.1} parent=1 // loop_footer_branch
      %22 = sbr.rel target = $region3
    $region8: #{tpu_custom_call.1} parent=1 // loop_exit
      _
    %958 = vsyncpa [#allocation6], 1
    %s959 = scalar_lea.sflag [#allocation6], 1
    %960 = vsyncpa %s959, 1

</llo_original>
